<compile_context>
chip_gen: v6e
topology: v6e:2x2x1
jax: 0.10.0
libtpu: 0.0.40
codegen_flags: <defaults>
</compile_context>

<pallas_src>
import jax
import jax.numpy as jnp
import numpy as np
from jax.experimental import pallas as pl
from jax.experimental.pallas import tpu as pltpu


_VMEM_LIMIT_BYTES = 32 * 1024 * 1024   # explicit scoped-VMEM ceiling (safe on v5e/v6e/v7x)


# ----------------------------------------------------------------------------
# Pallas kernels
# ----------------------------------------------------------------------------

def _precond_in_kernel(coef_ref, xr_ref, xi_ref, yr_ref, yi_ref, o_ref):
    """net_in = [cin*x.re + cs*y.re, cin*x.im + cs*y.im, y.re, y.im] along channel."""
    n = pl.program_id(0)
    cin = coef_ref[n, 0]
    cs = coef_ref[n, 1]          # cshift scale: 0 ('edm'), 1 ('richter')
    yr = yr_ref[0]               # (bf, T)
    yi = yi_ref[0]
    dt = o_ref.dtype
    o_ref[0, 0] = (cin * xr_ref[0] + cs * yr).astype(dt)
    o_ref[0, 1] = (cin * xi_ref[0] + cs * yi).astype(dt)
    o_ref[0, 2] = yr.astype(dt)
    o_ref[0, 3] = yi.astype(dt)


def _precond_out_kernel(coef_ref, xr_ref, xi_ref, net_ref, or_ref, oi_ref):
    """out = cskip*x + cout*complex(net_out[:,0], net_out[:,1]) as re/im planes."""
    n = pl.program_id(0)
    cskip = coef_ref[n, 2]
    cout = coef_ref[n, 3]
    net_r = net_ref[0, 0].astype(jnp.float32)
    net_i = net_ref[0, 1].astype(jnp.float32)
    or_ref[0] = (cskip * xr_ref[0] + cout * net_r).astype(or_ref.dtype)
    oi_ref[0] = (cskip * xi_ref[0] + cout * net_i).astype(oi_ref.dtype)


# ----------------------------------------------------------------------------
# Tiling / wrappers
# ----------------------------------------------------------------------------

def _choose_freq_block(N, F, T, *, vmem_budget_bytes=24 << 20, min_grid=4):
    """Frequency tile: as large as the VMEM budget allows, multiple of 16 (or full F).

    The heavier call (precond_in) keeps 8 plane-blocks live (4 in + 4 out),
    double-buffered, f32 -> 8 * 2 * 4 * T_pad bytes per frequency row. The
    24 MiB budget respects v7x's smaller VMEM; v5e/v6e have ample headroom.
    Also keeps >= `min_grid` total grid steps (when F allows) so both v7x
    TensorCores get work.
    """
    t_pad = ((T + 127) // 128) * 128
    bytes_per_freq_row = 8 * 2 * 4 * t_pad
    max_bf = max(16, vmem_budget_bytes // bytes_per_freq_row)
    steps = -(-min_grid // max(N, 1))                   # ceil(min_grid / N)
    bf = min(max_bf, -(-F // steps))                    # ceil(F / steps)
    bf = max(16, (bf // 16) * 16)                       # sublane-dense for f32 & bf16
    if bf >= F:
        return F                                        # full extent is always legal
    return bf                                           # ragged tail handled by cdiv grid


def _pallas_precond_in(coef, xr, xi, yr, yi, *, net_in_dtype=jnp.float32):
    N, F, T = xr.shape
    bf = _choose_freq_block(N, F, T)
    grid = (N, pl.cdiv(F, bf))
    xspec = pl.BlockSpec((1, bf, T), lambda n, f: (n, f, 0))
    in_bytes = 4 * N * F * T * 4
    out_bytes = 4 * N * F * T * jnp.dtype(net_in_dtype).itemsize
    return pl.pallas_call(
        _precond_in_kernel,
        out_shape=jax.ShapeDtypeStruct((N, 4, F, T), net_in_dtype),
        grid_spec=pltpu.PrefetchScalarGridSpec(
            num_scalar_prefetch=0,
            grid=grid,
            in_specs=[
                pl.BlockSpec(memory_space=pltpu.MemorySpace.SMEM),  # (N,4) coef table
                xspec, xspec, xspec, xspec,
            ],
            out_specs=pl.BlockSpec((1, 4, bf, T), lambda n, f: (n, 0, f, 0)),
        ),
        compiler_params=pltpu.CompilerParams(
            dimension_semantics=("parallel", "parallel"),
            vmem_limit_bytes=_VMEM_LIMIT_BYTES),
        cost_estimate=pl.CostEstimate(
            flops=6 * N * F * T, transcendentals=0,
            bytes_accessed=in_bytes + out_bytes),
    )(coef, xr, xi, yr, yi)


def _pallas_precond_out(coef, xr, xi, net_out):
    N, F, T = xr.shape
    bf = _choose_freq_block(N, F, T)
    grid = (N, pl.cdiv(F, bf))
    xspec = pl.BlockSpec((1, bf, T), lambda n, f: (n, f, 0))
    nspec = pl.BlockSpec((1, 2, bf, T), lambda n, f: (n, 0, f, 0))
    plane = jax.ShapeDtypeStruct((N, F, T), jnp.float32)
    bytes_acc = N * F * T * (2 * 4 + 2 * net_out.dtype.itemsize + 2 * 4)
    return pl.pallas_call(
        _precond_out_kernel,
        out_shape=(plane, plane),
        grid_spec=pltpu.PrefetchScalarGridSpec(
            num_scalar_prefetch=0,
            grid=grid,
            in_specs=[
                pl.BlockSpec(memory_space=pltpu.MemorySpace.SMEM),  # (N,4) coef table
                xspec, xspec, nspec,
            ],
            out_specs=(xspec, xspec),
        ),
        compiler_params=pltpu.CompilerParams(
            dimension_semantics=("parallel", "parallel"),
            vmem_limit_bytes=_VMEM_LIMIT_BYTES),
        cost_estimate=pl.CostEstimate(
            flops=6 * N * F * T, transcendentals=0,
            bytes_accessed=bytes_acc),
    )(coef, xr, xi, net_out)


# ----------------------------------------------------------------------------
# Coefficients + forward
# ----------------------------------------------------------------------------

def precondition_coefficients(sigma, t, scaling, *, sigma_data, preset="edm"):
    """Per-batch scalar coefficients [cin, cshift_scale, cskip, cout] and cnoise.

    cshift = cshift_scale * y. These are N scalars computed in plain JAX; no
    tensor pre-scaling happens outside the kernels.
    """
    sigma = sigma.astype(jnp.float32)
    t = t.astype(jnp.float32)
    scaling = scaling.astype(jnp.float32)
    if preset == "edm":
        den = sigma ** 2 + sigma_data ** 2
        cskip = sigma_data ** 2 / den
        cout = sigma * sigma_data * jax.lax.rsqrt(den)
        cin = jax.lax.rsqrt(den)
        cshift_scale = jnp.zeros_like(sigma)          # cshift = 0
        cnoise = jnp.log(sigma) / 4.0
    elif preset == "richter":
        cskip = jnp.ones_like(sigma)
        cout = -scaling * sigma ** 2 / t
        cin = scaling
        cshift_scale = jnp.ones_like(sigma)           # cshift = y
        cnoise = jnp.log(t)
    else:
        raise ValueError(f"unknown preconditioning preset: {preset}")
    coef = jnp.stack([cin, cshift_scale, cskip, cout], axis=-1)   # (N, 4) -> SMEM
    return coef, cnoise


def preconditioning_forward_planar(xr, xi, yr, yi, sigma, t, *, net_apply, sigma_data,
                                   sde_s=lambda t: jnp.ones_like(t), preset="edm",
                                   net_in_dtype=jnp.float32):
    """Fast path: real/imag planes in (N, F, T), real/imag planes out.

    Keeping the SGMSE state planar across the sampler removes every
    complex<->planar HBM round trip around this module.
    """
    coef, cnoise = precondition_coefficients(
        sigma, t, sde_s(t), sigma_data=sigma_data, preset=preset)
    net_in = _pallas_precond_in(coef, xr, xi, yr, yi,
                                net_in_dtype=net_in_dtype)       # (N, 4, F, T)
    # TODO(synk): self.net (raw_net, e.g. the NCSN++ UNet in brever) is an external
    # module with no single Pallas equivalent; it is invoked here as a plain JAX
    # callable between the two Pallas kernels.
    net_out = net_apply(net_in, cnoise)                          # (N, 2, F, T)
    out_r, out_i = _pallas_precond_out(coef, xr, xi, net_out)    # (N, F, T) each
    return out_r, out_i


def preconditioning_forward(x, y, sigma, t, **kwargs):
    """Compatibility wrapper matching the PyTorch module (complex64 in/out).

    NOTE: prefer preconditioning_forward_planar in a full SGMSE sampler; the
    complex<->planar conversions below are extra HBM passes.
    """
    xr, xi = jnp.real(x[:, 0]), jnp.imag(x[:, 0])
    yr, yi = jnp.real(y[:, 0]), jnp.imag(y[:, 0])
    out_r, out_i = preconditioning_forward_planar(xr, xi, yr, yi, sigma, t, **kwargs)
    return jax.lax.complex(out_r, out_i)[:, None]                # (N, 1, F, T)


# ----------------------------------------------------------------------------
# Stand-in net + pure-JAX reference
# ----------------------------------------------------------------------------

def make_standin_net(key, in_ch=4, out_ch=2):
    """Tiny deterministic stand-in for raw_net (1x1 conv + cnoise FiLM bias)."""
    k1, k2 = jax.random.split(key)
    params = {
        "w": 0.1 * jax.random.normal(k1, (out_ch, in_ch), jnp.float32),
        "emb_w": 0.1 * jax.random.normal(k2, (2, out_ch), jnp.float32),
    }

    def apply(net_in, cnoise):
        emb = jnp.stack([jnp.sin(cnoise), jnp.cos(cnoise)], axis=-1)   # (N, 2)
        bias = emb @ params["emb_w"]                                   # (N, out_ch)
        h = jnp.einsum("ncft,oc->noft", net_in.astype(jnp.float32), params["w"])
        return jnp.tanh(h + bias[:, :, None, None])

    return apply


def reference_forward(x, y, sigma, t, *, net_apply, sigma_data,
                      sde_s=lambda t: jnp.ones_like(t), preset="edm"):
    """Pure-JAX mirror of the PyTorch Preconditioning.forward."""
    coef, cnoise = precondition_coefficients(
        sigma, t, sde_s(t), sigma_data=sigma_data, preset=preset)
    cin, cs, cskip, cout = (coef[:, i][:, None, None, None] for i in range(4))
    x_in = cin * x + cs * y                                     # cshift = cs * y
    net_in = jnp.concatenate([x_in.real, x_in.imag, y.real, y.imag], axis=1)
    net_out = net_apply(net_in, cnoise)
    net_out_c = jax.lax.complex(net_out[:, 0], net_out[:, 1])[:, None]
    return cskip * x + cout * net_out_c


# ----------------------------------------------------------------------------
# Demo / correctness check
# ----------------------------------------------------------------------------

if __name__ == "__main__":
    N, F, T = 2, 32, 128          # batch of 1-channel complex F x T spectrograms
    sigma_data = 0.5

    key = jax.random.PRNGKey(0)
    kxr, kxi, kyr, kyi, ks, kn = jax.random.split(key, 6)
    xr = jax.random.normal(kxr, (N, F, T), jnp.float32)
    xi = jax.random.normal(kxi, (N, F, T), jnp.float32)
    yr = jax.random.normal(kyr, (N, F, T), jnp.float32)
    yi = jax.random.normal(kyi, (N, F, T), jnp.float32)
    sigma = jnp.exp(jax.random.normal(ks, (N,), jnp.float32))   # log-normal noise levels
    t = sigma                                                   # VE SDE: sigma(t) = t

    net_apply = make_standin_net(kn)

    # Fast planar path (no complex<->planar HBM passes).
    out_r, out_i = preconditioning_forward_planar(
        xr, xi, yr, yi, sigma, t, net_apply=net_apply, sigma_data=sigma_data)
    out_r, out_i = jax.block_until_ready((out_r, out_i))

    # Pure-JAX mirror of the PyTorch module (complex in/out) for the check.
    x = jax.lax.complex(xr, xi)[:, None]
    y = jax.lax.complex(yr, yi)[:, None]
    ref = jax.block_until_ready(
        reference_forward(x, y, sigma, t, net_apply=net_apply, sigma_data=sigma_data))

    np.testing.assert_allclose(np.asarray(out_r), np.asarray(ref.real[:, 0]),
                               atol=1e-5, rtol=1e-5)
    np.testing.assert_allclose(np.asarray(out_i), np.asarray(ref.imag[:, 0]),
                               atol=1e-5, rtol=1e-5)

    # Also exercise the complex-compat wrapper (original module signature).
    out_c = jax.block_until_ready(
        preconditioning_forward(x, y, sigma, t, net_apply=net_apply,
                                sigma_data=sigma_data))
    assert out_c.shape == (N, 1, F, T) and out_c.dtype == jnp.complex64
    np.testing.assert_allclose(np.asarray(out_c), np.asarray(ref),
                               atol=1e-5, rtol=1e-5)

    print("KERNEL_OK")
</pallas_src>

<mosaic_0001>
module attributes {stable_mosaic.version = 11 : i64} {
  func.func @_precond_in_kernel(%arg0: i32, %arg1: i32, %arg2: memref<2x4xf32, #tpu.memory_space<smem>>, %arg3: memref<1x16x128xf32, #tpu.memory_space<vmem>>, %arg4: memref<1x16x128xf32, #tpu.memory_space<vmem>>, %arg5: memref<1x16x128xf32, #tpu.memory_space<vmem>>, %arg6: memref<1x16x128xf32, #tpu.memory_space<vmem>>, %arg7: memref<1x4x16x128xf32, #tpu.memory_space<vmem>>) attributes {dimension_semantics = [#tpu.dimension_semantics<parallel>, #tpu.dimension_semantics<parallel>], iteration_bounds = array<i64: 2, 2>, scalar_prefetch = 0 : i64, scratch_operands = 0 : i64, tpu.core_type = #tpu.core_type<tc>, window_params = [{transform_indices = @transform_0, window_bounds = array<i64: 2, 4>}, {transform_indices = @transform_1, window_bounds = array<i64: 1, 16, 128>}, {transform_indices = @transform_2, window_bounds = array<i64: 1, 16, 128>}, {transform_indices = @transform_3, window_bounds = array<i64: 1, 16, 128>}, {transform_indices = @transform_4, window_bounds = array<i64: 1, 16, 128>}, {transform_indices = @transform_5, window_bounds = array<i64: 1, 4, 16, 128>}]} {
    %0 = arith.index_cast %arg0 : i32 to index
    %c0 = arith.constant 0 : index
    %1 = memref.load %arg2[%0, %c0] : memref<2x4xf32, #tpu.memory_space<smem>>
    %2 = arith.index_cast %arg0 : i32 to index
    %c1 = arith.constant 1 : index
    %3 = memref.load %arg2[%2, %c1] : memref<2x4xf32, #tpu.memory_space<smem>>
    %c0_0 = arith.constant 0 : index
    %c0_1 = arith.constant 0 : index
    %c0_2 = arith.constant 0 : index
    %4 = vector.load %arg5[%c0_0, %c0_1, %c0_2] : memref<1x16x128xf32, #tpu.memory_space<vmem>>, vector<1x16x128xf32>
    %5 = vector.shape_cast %4 : vector<1x16x128xf32> to vector<16x128xf32>
    %c0_3 = arith.constant 0 : index
    %c0_4 = arith.constant 0 : index
    %c0_5 = arith.constant 0 : index
    %6 = vector.load %arg6[%c0_3, %c0_4, %c0_5] : memref<1x16x128xf32, #tpu.memory_space<vmem>>, vector<1x16x128xf32>
    %7 = vector.shape_cast %6 : vector<1x16x128xf32> to vector<16x128xf32>
    %c0_6 = arith.constant 0 : index
    %c0_7 = arith.constant 0 : index
    %c0_8 = arith.constant 0 : index
    %8 = vector.load %arg3[%c0_6, %c0_7, %c0_8] : memref<1x16x128xf32, #tpu.memory_space<vmem>>, vector<1x16x128xf32>
    %9 = vector.shape_cast %8 : vector<1x16x128xf32> to vector<16x128xf32>
    %10 = vector.broadcast %1 : f32 to vector<16x128xf32>
    %11 = arith.mulf %10, %9 : vector<16x128xf32>
    %12 = vector.broadcast %3 : f32 to vector<16x128xf32>
    %13 = arith.mulf %12, %5 : vector<16x128xf32>
    %14 = arith.addf %11, %13 : vector<16x128xf32>
    %c0_9 = arith.constant 0 : index
    %c0_10 = arith.constant 0 : index
    %c0_11 = arith.constant 0 : index
    %c0_12 = arith.constant 0 : index
    %15 = vector.load %arg7[%c0_9, %c0_10, %c0_11, %c0_12] : memref<1x4x16x128xf32, #tpu.memory_space<vmem>>, vector<1x1x16x128xf32>
    %16 = vector.shape_cast %15 : vector<1x1x16x128xf32> to vector<16x128xf32>
    %17 = vector.shape_cast %14 : vector<16x128xf32> to vector<1x1x16x128xf32>
    tpu.vector_store %arg7[%c0_9, %c0_10, %c0_11, %c0_12], %17 {strides = array<i32>} : memref<1x4x16x128xf32, #tpu.memory_space<vmem>>, vector<1x1x16x128xf32>,
    %c0_13 = arith.constant 0 : index
    %c0_14 = arith.constant 0 : index
    %c0_15 = arith.constant 0 : index
    %18 = vector.load %arg4[%c0_13, %c0_14, %c0_15] : memref<1x16x128xf32, #tpu.memory_space<vmem>>, vector<1x16x128xf32>
    %19 = vector.shape_cast %18 : vector<1x16x128xf32> to vector<16x128xf32>
    %20 = vector.broadcast %1 : f32 to vector<16x128xf32>
    %21 = arith.mulf %20, %19 : vector<16x128xf32>
    %22 = vector.broadcast %3 : f32 to vector<16x128xf32>
    %23 = arith.mulf %22, %7 : vector<16x128xf32>
    %24 = arith.addf %21, %23 : vector<16x128xf32>
    %c0_16 = arith.constant 0 : index
    %c1_17 = arith.constant 1 : index
    %c0_18 = arith.constant 0 : index
    %c0_19 = arith.constant 0 : index
    %25 = vector.load %arg7[%c0_16, %c1_17, %c0_18, %c0_19] : memref<1x4x16x128xf32, #tpu.memory_space<vmem>>, vector<1x1x16x128xf32>
    %26 = vector.shape_cast %25 : vector<1x1x16x128xf32> to vector<16x128xf32>
    %27 = vector.shape_cast %24 : vector<16x128xf32> to vector<1x1x16x128xf32>
    tpu.vector_store %arg7[%c0_16, %c1_17, %c0_18, %c0_19], %27 {strides = array<i32>} : memref<1x4x16x128xf32, #tpu.memory_space<vmem>>, vector<1x1x16x128xf32>,
    %c0_20 = arith.constant 0 : index
    %c2 = arith.constant 2 : index
    %c0_21 = arith.constant 0 : index
    %c0_22 = arith.constant 0 : index
    %28 = vector.load %arg7[%c0_20, %c2, %c0_21, %c0_22] : memref<1x4x16x128xf32, #tpu.memory_space<vmem>>, vector<1x1x16x128xf32>
    %29 = vector.shape_cast %28 : vector<1x1x16x128xf32> to vector<16x128xf32>
    %30 = vector.shape_cast %5 : vector<16x128xf32> to vector<1x1x16x128xf32>
    tpu.vector_store %arg7[%c0_20, %c2, %c0_21, %c0_22], %30 {strides = array<i32>} : memref<1x4x16x128xf32, #tpu.memory_space<vmem>>, vector<1x1x16x128xf32>,
    %c0_23 = arith.constant 0 : index
    %c3 = arith.constant 3 : index
    %c0_24 = arith.constant 0 : index
    %c0_25 = arith.constant 0 : index
    %31 = vector.load %arg7[%c0_23, %c3, %c0_24, %c0_25] : memref<1x4x16x128xf32, #tpu.memory_space<vmem>>, vector<1x1x16x128xf32>
    %32 = vector.shape_cast %31 : vector<1x1x16x128xf32> to vector<16x128xf32>
    %33 = vector.shape_cast %7 : vector<16x128xf32> to vector<1x1x16x128xf32>
    tpu.vector_store %arg7[%c0_23, %c3, %c0_24, %c0_25], %33 {strides = array<i32>} : memref<1x4x16x128xf32, #tpu.memory_space<vmem>>, vector<1x1x16x128xf32>,
    return
  }
  func.func @transform_0(%arg0: i32, %arg1: i32) -> (i32, i32) {
    %c0_i32 = arith.constant 0 : i32
    %c0_i32_0 = arith.constant 0 : i32
    %c0_i32_1 = arith.constant 0 : i32
    return %c0_i32, %c0_i32_0 : i32, i32
  }
  func.func @transform_1(%arg0: i32, %arg1: i32) -> (i32, i32, i32) {
    %c0_i32 = arith.constant 0 : i32
    %c0_i32_0 = arith.constant 0 : i32
    return %arg0, %arg1, %c0_i32 : i32, i32, i32
  }
  func.func @transform_2(%arg0: i32, %arg1: i32) -> (i32, i32, i32) {
    %c0_i32 = arith.constant 0 : i32
    %c0_i32_0 = arith.constant 0 : i32
    return %arg0, %arg1, %c0_i32 : i32, i32, i32
  }
  func.func @transform_3(%arg0: i32, %arg1: i32) -> (i32, i32, i32) {
    %c0_i32 = arith.constant 0 : i32
    %c0_i32_0 = arith.constant 0 : i32
    return %arg0, %arg1, %c0_i32 : i32, i32, i32
  }
  func.func @transform_4(%arg0: i32, %arg1: i32) -> (i32, i32, i32) {
    %c0_i32 = arith.constant 0 : i32
    %c0_i32_0 = arith.constant 0 : i32
    return %arg0, %arg1, %c0_i32 : i32, i32, i32
  }
  func.func @transform_5(%arg0: i32, %arg1: i32) -> (i32, i32, i32, i32) {
    %c0_i32 = arith.constant 0 : i32
    %c0_i32_0 = arith.constant 0 : i32
    %c0_i32_1 = arith.constant 0 : i32
    return %arg0, %c0_i32, %arg1, %c0_i32_0 : i32, i32, i32, i32
  }
}

</mosaic_0001>

<llo_original>
// kernel: tpu_custom_call.1
$region0: #{tpu_custom_call.1}
  #allocation0 [shape = 'u32[]', space=smem, size = 0x4, offset = 0x4, fixed_abs, tag = 'smem constant byte address 0x4 - core index']
  #allocation1 [shape = 'u32[144,128]{1,0:T(1,128)}', space=vmem, size = 0x12000, scoped, tag = 'internal scratch']
  #allocation13 [shape = 's32[]', space=sflag, size = 0x4, offset = 0, fixed_abs, tag = 'sflag constant byte address 0x0 - dummy sync flag']
  %s0 = inlined_call_operand.hbm [shape: f32[2,4], index: 0, kind: input, shape index: {}]
  %s1 = inlined_call_operand.hbm [shape: f32[2,32,128], index: 1, kind: input, shape index: {}]
  %s2 = inlined_call_operand.hbm [shape: f32[2,32,128], index: 2, kind: input, shape index: {}]
  %s3 = inlined_call_operand.hbm [shape: f32[2,32,128], index: 3, kind: input, shape index: {}]
  %s4 = inlined_call_operand.hbm [shape: f32[2,32,128], index: 4, kind: input, shape index: {}]
  %s5 = inlined_call_operand.hbm [shape: f32[2,4,32,128], index: 5, kind: output, shape index: {}]
  %s6 = sld [smem:[#allocation0]]
  $region73: #{tpu_custom_call.1} parent=0
    _
  %s8 = ssub.s32 1, %s6
  %s9 = scalar_select 0, %s8, %s6
  $region1: #{tpu_custom_call.1} parent=0
    #allocation2 [shape = 'u8[1024]{0}', space=smem, size = 0x400, scoped, tag = 'input window, operand 0, single buffered']
    #allocation3 [shape = 's32[2]{0}', space=sflag, size = 0x8, scoped, tag = 'scoped memory for tpu_custom_call.1']
    #allocation4 [shape = 's32[2]{0}', space=sflag, size = 0x8, scoped, tag = 'scoped memory for tpu_custom_call.1']
    #allocation5 [shape = 's32[2]{0}', space=sflag, size = 0x8, scoped, tag = 'scoped memory for tpu_custom_call.1']
    #allocation6 [shape = 'u8[16384]{0}', space=vmem, size = 0x4000, scoped, tag = 'input window, operand 1']
    #allocation7 [shape = 'u8[16384]{0}', space=vmem, size = 0x4000, scoped, tag = 'input window, operand 2']
    #allocation8 [shape = 's32[2]{0}', space=sflag, size = 0x8, scoped, tag = 'scoped memory for tpu_custom_call.1']
    #allocation9 [shape = 'u8[16384]{0}', space=vmem, size = 0x4000, scoped, tag = 'input window, operand 3']
    #allocation10 [shape = 'u8[16384]{0}', space=vmem, size = 0x4000, scoped, tag = 'input window, operand 4']
    #allocation11 [shape = 's32[2]{0}', space=sflag, size = 0x8, scoped, tag = 'scoped memory for tpu_custom_call.1']
    #allocation12 [shape = 'u8[65536]{0}', space=vmem, size = 0x10000, scoped, tag = 'output window, operand 0']
    %10 = vsyncpa [#allocation5], 0
    %11 = vsyncpa [#allocation3], 0
    %s12 = scalar_lea.sflag [#allocation3], 1
    %13 = vsyncpa %s12, 0
    %14 = vsyncpa [#allocation8], 0
    %s15 = scalar_lea.sflag [#allocation8], 1
    %16 = vsyncpa %s15, 0
    %17 = vsyncpa [#allocation11], 0
    %s18 = scalar_lea.sflag [#allocation11], 1
    %19 = vsyncpa %s18, 0
    %20 = vsyncpa [#allocation4], 0
    %s21 = scalar_lea.sflag [#allocation4], 1
    %22 = vsyncpa %s21, 0
    loop: start=0, step=1, limit=6
    $region2: #{tpu_custom_call.1} parent=1 // loop_pre_header
      _
    $region3: #{tpu_custom_call.1} parent=1 // loop_header
      %s24 = sphi 0, %s28
      %p25 = scmp.ge.s32.totalorder %s24, 6
      %s31 = sphi 0, %s43
      %s32 = sphi 0, %s39
      %s33 = sphi 0, %s31
      %s34 = sphi 0, %s32
      %s35 = sphi 0, %s33
      %s36 = sphi 0, %s34
      %s44 = sphi 0, %s44
      %s46 = sphi 0, %s44
      %s47 = sphi 0, %s46
      %s61 = sphi 0, %s47
      %s69 = sphi 0, %s71
      %s72 = sphi 0, %s69
      %s73 = sphi 0, %s72
      %s89 = sphi 0, %s73
      %s97 = sphi 0, %s99
      %s100 = sphi 0, %s97
      %s101 = sphi 0, %s100
      %s117 = sphi 0, %s101
      %s125 = sphi 0, %s127
      %s128 = sphi 0, %s125
      %s129 = sphi 0, %s128
      %s145 = sphi 0, %s129
      %s153 = sphi 0, %s155
      %s156 = sphi 0, %s153
      %s157 = sphi 0, %s156
      %s173 = sphi 0, %s157
      %s181 = sphi 0, %s183
      %s184 = sphi 0, %s181
      %s185 = sphi 0, %s184
      %s201 = sphi 0, %s185
    $region4: #{tpu_custom_call.1} parent=1 // loop_header_branch
      %27 = sbr.rel (%p25) target = $region8
    $region5: #{tpu_custom_call.1} parent=1 // loop_body
      %s29 = ssub.s32 %s24, 1
      %s30 = ssub.s32 %s24, 2
      %s37 = sadd.s32 1, %s32
      %p38 = scmp.ge.s32.totalorder %s37, 2
      %s39 = scalar_select %p38, 0, %s37
      %s40 = sadd.s32 1, %s31
      %s41 = scalar_select %p38, %s40, %s31
      %p42 = scmp.ge.s32.totalorder %s41, 2
      %s43 = scalar_select %p42, 0, %s41
      %s45 = sadd.s32 %s44, 1
      %p48 = scmp.eq.s32.totalorder %s24, 3
      %p49 = scmp.ne.s32.totalorder %s44, %s46
      %p50 = scmp.eq.s32.totalorder %s24, 0
      %p51 = por %p49, %p50
      %p52 = scmp.ne.s32.totalorder %s44, %s46
      %p53 = scmp.eq.s32.totalorder %s29, 3
      %p54 = por %p52, %p53
      %p55 = scmp.ne.s32.totalorder %s46, %s47
      %p56 = scmp.eq.s32.totalorder %s29, 0
      %p57 = por %p55, %p56
      %p58 = scmp.ne.s32.totalorder %s46, %s47
      %p59 = scmp.eq.s32.totalorder %s30, 3
      %p60 = por %p58, %p59
      %p62 = scmp.ne.s32.totalorder %s47, %s61
      %p63 = scmp.eq.s32.totalorder %s30, 0
      %p64 = por %p62, %p63
      %s65 = ssub.s32 %s31, %s43
      %s66 = ssub.s32 %s32, %s39
      %s67 = sor.u32 %s65, %s66
      %p68 = scmp.eq.s32.totalorder %s67, 0
      %s70 = sadd.s32 %s69, 1
      %s71 = scalar_select %p68, %s69, %s70
      %p74 = pneg %p68
      %p75 = scmp.eq.s32.totalorder %s24, 3
      %p76 = por %p74, %p75
      %p77 = scmp.ne.s32.totalorder %s69, %s72
      %p78 = scmp.eq.s32.totalorder %s24, 0
      %p79 = por %p77, %p78
      %p80 = scmp.ne.s32.totalorder %s69, %s72
      %p81 = scmp.eq.s32.totalorder %s29, 3
      %p82 = por %p80, %p81
      %p83 = scmp.ne.s32.totalorder %s72, %s73
      %p84 = scmp.eq.s32.totalorder %s29, 0
      %p85 = por %p83, %p84
      %p86 = scmp.ne.s32.totalorder %s72, %s73
      %p87 = scmp.eq.s32.totalorder %s30, 3
      %p88 = por %p86, %p87
      %p90 = scmp.ne.s32.totalorder %s73, %s89
      %p91 = scmp.eq.s32.totalorder %s30, 0
      %p92 = por %p90, %p91
      %s93 = ssub.s32 %s31, %s43
      %s94 = ssub.s32 %s32, %s39
      %s95 = sor.u32 %s93, %s94
      %p96 = scmp.eq.s32.totalorder %s95, 0
      %s98 = sadd.s32 %s97, 1
      %s99 = scalar_select %p96, %s97, %s98
      %p102 = pneg %p96
      %p103 = scmp.eq.s32.totalorder %s24, 3
      %p104 = por %p102, %p103
      %p105 = scmp.ne.s32.totalorder %s97, %s100
      %p106 = scmp.eq.s32.totalorder %s24, 0
      %p107 = por %p105, %p106
      %p108 = scmp.ne.s32.totalorder %s97, %s100
      %p109 = scmp.eq.s32.totalorder %s29, 3
      %p110 = por %p108, %p109
      %p111 = scmp.ne.s32.totalorder %s100, %s101
      %p112 = scmp.eq.s32.totalorder %s29, 0
      %p113 = por %p111, %p112
      %p114 = scmp.ne.s32.totalorder %s100, %s101
      %p115 = scmp.eq.s32.totalorder %s30, 3
      %p116 = por %p114, %p115
      %p118 = scmp.ne.s32.totalorder %s101, %s117
      %p119 = scmp.eq.s32.totalorder %s30, 0
      %p120 = por %p118, %p119
      %s121 = ssub.s32 %s31, %s43
      %s122 = ssub.s32 %s32, %s39
      %s123 = sor.u32 %s121, %s122
      %p124 = scmp.eq.s32.totalorder %s123, 0
      %s126 = sadd.s32 %s125, 1
      %s127 = scalar_select %p124, %s125, %s126
      %p130 = pneg %p124
      %p131 = scmp.eq.s32.totalorder %s24, 3
      %p132 = por %p130, %p131
      %p133 = scmp.ne.s32.totalorder %s125, %s128
      %p134 = scmp.eq.s32.totalorder %s24, 0
      %p135 = por %p133, %p134
      %p136 = scmp.ne.s32.totalorder %s125, %s128
      %p137 = scmp.eq.s32.totalorder %s29, 3
      %p138 = por %p136, %p137
      %p139 = scmp.ne.s32.totalorder %s128, %s129
      %p140 = scmp.eq.s32.totalorder %s29, 0
      %p141 = por %p139, %p140
      %p142 = scmp.ne.s32.totalorder %s128, %s129
      %p143 = scmp.eq.s32.totalorder %s30, 3
      %p144 = por %p142, %p143
      %p146 = scmp.ne.s32.totalorder %s129, %s145
      %p147 = scmp.eq.s32.totalorder %s30, 0
      %p148 = por %p146, %p147
      %s149 = ssub.s32 %s31, %s43
      %s150 = ssub.s32 %s32, %s39
      %s151 = sor.u32 %s149, %s150
      %p152 = scmp.eq.s32.totalorder %s151, 0
      %s154 = sadd.s32 %s153, 1
      %s155 = scalar_select %p152, %s153, %s154
      %p158 = pneg %p152
      %p159 = scmp.eq.s32.totalorder %s24, 3
      %p160 = por %p158, %p159
      %p161 = scmp.ne.s32.totalorder %s153, %s156
      %p162 = scmp.eq.s32.totalorder %s24, 0
      %p163 = por %p161, %p162
      %p164 = scmp.ne.s32.totalorder %s153, %s156
      %p165 = scmp.eq.s32.totalorder %s29, 3
      %p166 = por %p164, %p165
      %p167 = scmp.ne.s32.totalorder %s156, %s157
      %p168 = scmp.eq.s32.totalorder %s29, 0
      %p169 = por %p167, %p168
      %p170 = scmp.ne.s32.totalorder %s156, %s157
      %p171 = scmp.eq.s32.totalorder %s30, 3
      %p172 = por %p170, %p171
      %p174 = scmp.ne.s32.totalorder %s157, %s173
      %p175 = scmp.eq.s32.totalorder %s30, 0
      %p176 = por %p174, %p175
      %s177 = ssub.s32 %s31, %s43
      %s178 = ssub.s32 %s32, %s39
      %s179 = sor.u32 %s177, %s178
      %p180 = scmp.eq.s32.totalorder %s179, 0
      %s182 = sadd.s32 %s181, 1
      %s183 = scalar_select %p180, %s181, %s182
      %p186 = pneg %p180
      %p187 = scmp.eq.s32.totalorder %s24, 3
      %p188 = por %p186, %p187
      %p189 = scmp.ne.s32.totalorder %s181, %s184
      %p190 = scmp.eq.s32.totalorder %s24, 0
      %p191 = por %p189, %p190
      %p192 = scmp.ne.s32.totalorder %s181, %s184
      %p193 = scmp.eq.s32.totalorder %s29, 3
      %p194 = por %p192, %p193
      %p195 = scmp.ne.s32.totalorder %s184, %s185
      %p196 = scmp.eq.s32.totalorder %s29, 0
      %p197 = por %p195, %p196
      %p198 = scmp.ne.s32.totalorder %s184, %s185
      %p199 = scmp.eq.s32.totalorder %s30, 3
      %p200 = por %p198, %p199
      %p202 = scmp.ne.s32.totalorder %s185, %s201
      %p203 = scmp.eq.s32.totalorder %s30, 0
      %p204 = por %p202, %p203
      %p205 = scmp.le.s32.totalorder 1, %s24
      %p206 = scmp.lt.s32.totalorder %s24, 5
      %p207 = pnand %p205, %p206
      %p208 = pneg %p207
      // Predicated region
      $region9: #{tpu_custom_call.1} parent=5 // pred_check
        _
      $region10: #{tpu_custom_call.1} parent=5 // pred_check_branch
        %210 = sbr.rel (%p207) target = $region12
      $region11: #{tpu_custom_call.1} parent=5 // pred_region
        %s211 = ssub.s32 %s24, 1
        // Predicated region
        $region13: #{tpu_custom_call.1} parent=11 // pred_check
          %p212 = pneg %p57
        $region14: #{tpu_custom_call.1} parent=11 // pred_check_branch
          %214 = sbr.rel (%p212) target = $region16
        $region15: #{tpu_custom_call.1} parent=11 // pred_region
          %s216 = ssub.s32 32, 32
          %217 = vsyncadd [#allocation5], %s216
          %220 = dma.hbm_to_smem %s0, 32, [#allocation2], [#allocation5]
        $region16: #{tpu_custom_call.1} parent=11 // pred_fallthru
          _
      $region12: #{tpu_custom_call.1} parent=5 // pred_fallthru
        _
      %p221 = scmp.lt.s32.totalorder %s24, 4
      // Predicated region
      $region17: #{tpu_custom_call.1} parent=5 // pred_check
        %p222 = pneg %p221
      $region18: #{tpu_custom_call.1} parent=5 // pred_check_branch
        %224 = sbr.rel (%p222) target = $region20
      $region19: #{tpu_custom_call.1} parent=5 // pred_region
        // Predicated region
        $region21: #{tpu_custom_call.1} parent=19 // pred_check
          %p225 = pneg %p79
        $region22: #{tpu_custom_call.1} parent=19 // pred_check_branch
          %227 = sbr.rel (%p225) target = $region24
        $region23: #{tpu_custom_call.1} parent=19 // pred_region
          %s228 = sand.u32 %s69, 1
          %s229 = scalar_lea.sflag [#allocation3], %s228
          %s230 = sand.u32 %s69, 1
          %s231 = smul.addr %s230, 16
          %s232 = scalar_lea.vmem [#allocation6], %s231
          %s233 = smul.u32 2, %s32
          %s235 = ssub.s32 256, 256
          %236 = vsyncadd %s229, %s235
          %s237 = smul.addr %s31, 4
          %s238 = sadd.s32 %s233, %s237
          %s239 = smul.addr %s238, 128
          %s240 = scalar_lea.hbm %s1, %s239
          %s241 = sshll.u32 %s232, 4
          %s242 = int_to_ptr.vmem [resolvable:$true] %s241
          %247 = dma.hbm_to_vmem [thread:$0]  %s240, 256, %s242, %s229, 128, 128, 8
        $region24: #{tpu_custom_call.1} parent=19 // pred_fallthru
          _
        // Predicated region
        $region25: #{tpu_custom_call.1} parent=19 // pred_check
          %p248 = pneg %p107
        $region26: #{tpu_custom_call.1} parent=19 // pred_check_branch
          %250 = sbr.rel (%p248) target = $region28
        $region27: #{tpu_custom_call.1} parent=19 // pred_region
          %s251 = sand.u32 %s24, 1
          %s252 = scalar_lea.sflag [#allocation8], %s251
          %s253 = sand.u32 %s97, 1
          %s254 = smul.addr %s253, 16
          %s255 = scalar_lea.vmem [#allocation7], %s254
          %s256 = smul.u32 2, %s32
          %s258 = ssub.s32 256, 256
          %259 = vsyncadd %s252, %s258
          %s260 = smul.addr %s31, 4
          %s261 = sadd.s32 %s256, %s260
          %s262 = smul.addr %s261, 128
          %s263 = scalar_lea.hbm %s2, %s262
          %s264 = sshll.u32 %s255, 4
          %s265 = int_to_ptr.vmem [resolvable:$true] %s264
          %270 = dma.hbm_to_vmem [thread:$0]  %s263, 256, %s265, %s252, 128, 128, 8
        $region28: #{tpu_custom_call.1} parent=19 // pred_fallthru
          _
        // Predicated region
        $region29: #{tpu_custom_call.1} parent=19 // pred_check
          %p271 = pneg %p135
        $region30: #{tpu_custom_call.1} parent=19 // pred_check_branch
          %273 = sbr.rel (%p271) target = $region32
        $region31: #{tpu_custom_call.1} parent=19 // pred_region
          %s274 = sand.u32 %s24, 1
          %s275 = scalar_lea.sflag [#allocation8], %s274
          %s276 = sand.u32 %s125, 1
          %s277 = smul.addr %s276, 16
          %s278 = scalar_lea.vmem [#allocation9], %s277
          %s279 = smul.u32 2, %s32
          %s281 = ssub.s32 256, 256
          %282 = vsyncadd %s275, %s281
          %s283 = smul.addr %s31, 4
          %s284 = sadd.s32 %s279, %s283
          %s285 = smul.addr %s284, 128
          %s286 = scalar_lea.hbm %s3, %s285
          %s287 = sshll.u32 %s278, 4
          %s288 = int_to_ptr.vmem [resolvable:$true] %s287
          %293 = dma.hbm_to_vmem [thread:$0]  %s286, 256, %s288, %s275, 128, 128, 8
        $region32: #{tpu_custom_call.1} parent=19 // pred_fallthru
          _
        // Predicated region
        $region33: #{tpu_custom_call.1} parent=19 // pred_check
          %p294 = pneg %p163
        $region34: #{tpu_custom_call.1} parent=19 // pred_check_branch
          %296 = sbr.rel (%p294) target = $region36
        $region35: #{tpu_custom_call.1} parent=19 // pred_region
          %s297 = sand.u32 %s153, 1
          %s298 = scalar_lea.sflag [#allocation11], %s297
          %s299 = sand.u32 %s153, 1
          %s300 = smul.addr %s299, 16
          %s301 = scalar_lea.vmem [#allocation10], %s300
          %s302 = smul.u32 2, %s32
          %s304 = ssub.s32 256, 256
          %305 = vsyncadd %s298, %s304
          %s306 = smul.addr %s31, 4
          %s307 = sadd.s32 %s302, %s306
          %s308 = smul.addr %s307, 128
          %s309 = scalar_lea.hbm %s4, %s308
          %s310 = sshll.u32 %s301, 4
          %s311 = int_to_ptr.vmem [resolvable:$true] %s310
          %316 = dma.hbm_to_vmem [thread:$0]  %s309, 256, %s311, %s298, 128, 128, 8
        $region36: #{tpu_custom_call.1} parent=19 // pred_fallthru
          _
      $region20: #{tpu_custom_call.1} parent=5 // pred_fallthru
        _
      %p317 = scmp.le.s32.totalorder 1, %s24
      %p318 = scmp.lt.s32.totalorder %s24, 5
      %p319 = pnand %p317, %p318
      %p320 = pneg %p319
      // Predicated region
      $region37: #{tpu_custom_call.1} parent=5 // pred_check
        _
      $region38: #{tpu_custom_call.1} parent=5 // pred_check_branch
        %322 = sbr.rel (%p319) target = $region40
      $region39: #{tpu_custom_call.1} parent=5 // pred_region
        %s323 = ssub.s32 %s24, 1
        // Predicated region
        $region41: #{tpu_custom_call.1} parent=39 // pred_check
          %p324 = pneg %p57
        $region42: #{tpu_custom_call.1} parent=39 // pred_check_branch
          %326 = sbr.rel (%p324) target = $region44
        $region43: #{tpu_custom_call.1} parent=39 // pred_region
          %327 = dma.done [#allocation5], 32
        $region44: #{tpu_custom_call.1} parent=39 // pred_fallthru
          _
        %s328 = sand.u32 %s72, 1
        %s329 = scalar_lea.sflag [#allocation3], %s328
        %s330 = sand.u32 %s72, 1
        %s331 = smul.addr %s330, 16
        %s332 = scalar_lea.vmem [#allocation6], %s331
        // Predicated region
        $region45: #{tpu_custom_call.1} parent=39 // pred_check
          %p333 = pneg %p85
        $region46: #{tpu_custom_call.1} parent=39 // pred_check_branch
          %335 = sbr.rel (%p333) target = $region48
        $region47: #{tpu_custom_call.1} parent=39 // pred_region
          %336 = dma.done %s329, 256
        $region48: #{tpu_custom_call.1} parent=39 // pred_fallthru
          _
        %s337 = sand.u32 %s29, 1
        %s338 = scalar_lea.sflag [#allocation8], %s337
        %s339 = sand.u32 %s100, 1
        %s340 = smul.addr %s339, 16
        %s341 = scalar_lea.vmem [#allocation7], %s340
        // Predicated region
        $region49: #{tpu_custom_call.1} parent=39 // pred_check
          %p342 = pneg %p113
        $region50: #{tpu_custom_call.1} parent=39 // pred_check_branch
          %344 = sbr.rel (%p342) target = $region52
        $region51: #{tpu_custom_call.1} parent=39 // pred_region
          %345 = dma.done %s338, 256
        $region52: #{tpu_custom_call.1} parent=39 // pred_fallthru
          _
        %s346 = sand.u32 %s29, 1
        %s347 = scalar_lea.sflag [#allocation8], %s346
        %s348 = sand.u32 %s128, 1
        %s349 = smul.addr %s348, 16
        %s350 = scalar_lea.vmem [#allocation9], %s349
        // Predicated region
        $region53: #{tpu_custom_call.1} parent=39 // pred_check
          %p351 = pneg %p141
        $region54: #{tpu_custom_call.1} parent=39 // pred_check_branch
          %353 = sbr.rel (%p351) target = $region56
        $region55: #{tpu_custom_call.1} parent=39 // pred_region
          %354 = dma.done %s347, 256
        $region56: #{tpu_custom_call.1} parent=39 // pred_fallthru
          _
        %s355 = sand.u32 %s156, 1
        %s356 = scalar_lea.sflag [#allocation11], %s355
        %s357 = sand.u32 %s156, 1
        %s358 = smul.addr %s357, 16
        %s359 = scalar_lea.vmem [#allocation10], %s358
        // Predicated region
        $region57: #{tpu_custom_call.1} parent=39 // pred_check
          %p360 = pneg %p169
        $region58: #{tpu_custom_call.1} parent=39 // pred_check_branch
          %362 = sbr.rel (%p360) target = $region60
        $region59: #{tpu_custom_call.1} parent=39 // pred_region
          %363 = dma.done %s356, 256
        $region60: #{tpu_custom_call.1} parent=39 // pred_fallthru
          _
        %364 = sfence
        %p365 = pneg %p57
        %p366 = pneg %p54
        %s367 = sand.u32 %s72, 1
        %s368 = scalar_lea.sflag [#allocation3], %s367
        %s369 = sand.u32 %s72, 1
        %s370 = smul.addr %s369, 16
        %s371 = scalar_lea.vmem [#allocation6], %s370
        %p372 = pneg %p85
        %p373 = pneg %p82
        %s374 = sand.u32 %s29, 1
        %s375 = scalar_lea.sflag [#allocation8], %s374
        %s376 = sand.u32 %s100, 1
        %s377 = smul.addr %s376, 16
        %s378 = scalar_lea.vmem [#allocation7], %s377
        %p379 = pneg %p113
        %p380 = pneg %p110
        %s381 = sand.u32 %s29, 1
        %s382 = scalar_lea.sflag [#allocation8], %s381
        %s383 = sand.u32 %s128, 1
        %s384 = smul.addr %s383, 16
        %s385 = scalar_lea.vmem [#allocation9], %s384
        %p386 = pneg %p141
        %p387 = pneg %p138
        %s388 = sand.u32 %s156, 1
        %s389 = scalar_lea.sflag [#allocation11], %s388
        %s390 = sand.u32 %s156, 1
        %s391 = smul.addr %s390, 16
        %s392 = scalar_lea.vmem [#allocation10], %s391
        %p393 = pneg %p169
        %p394 = pneg %p166
        %p395 = pneg %p197
        %p396 = pneg %p194
        %s397 = sand.u32 %s184, 1
        %s398 = scalar_lea.sflag [#allocation4], %s397
        %s399 = sand.u32 %s184, 1
        %s400 = smul.addr %s399, 64
        %s401 = scalar_lea.vmem [#allocation12], %s400
        %s402 = smul.u32 2, %s34
        %s403 = smul.u32 2, %s34
        %s404 = smul.u32 2, %s34
        %s405 = smul.u32 2, %s34
        %s406 = smul.u32 2, %s34
        %s407 = smul.u32 %s33, 128
        %s408 = sld [smem:[#allocation2 + %s407]]
        %s409 = sadd.s32 %s407, 1
        %s410 = sld [smem:[#allocation2 + %s409]]
        %v411 = vld [vmem:[%s350] sm:$0xff]
        %v412 = vld [vmem:[%s350 + $0x8] sm:$0xff]
        %v413 = vld [vmem:[%s359] sm:$0xff]
        %v414 = vld [vmem:[%s359 + $0x8] sm:$0xff]
        %v415 = vld [vmem:[%s332] sm:$0xff]
        %v416 = vld [vmem:[%s332 + $0x8] sm:$0xff]
        %v417 = vstv %s408
        %v418 = vmul.f32 %v417, %v415
        %v419 = vmul.f32 %v417, %v416
        %v420 = vstv %s410
        %v421 = vmul.f32 %v420, %v411
        %v422 = vmul.f32 %v420, %v412
        %v423 = vadd.f32 %v418, %v421
        %v424 = vadd.f32 %v419, %v422
        %425 = vst [vmem:[%s401] sm:$0xff] %v423
        %426 = vst [vmem:[%s401 + $0x8] sm:$0xff] %v424
        %v427 = vld [vmem:[%s341] sm:$0xff]
        %v428 = vld [vmem:[%s341 + $0x8] sm:$0xff]
        %v429 = vmul.f32 %v417, %v427
        %v430 = vmul.f32 %v417, %v428
        %v431 = vmul.f32 %v420, %v413
        %v432 = vmul.f32 %v420, %v414
        %v433 = vadd.f32 %v429, %v431
        %v434 = vadd.f32 %v430, %v432
        %s435 = scalar_lea.vmem %s401, 16 [#allocation12]
        %436 = vst [vmem:[%s435] sm:$0xff] %v433
        %437 = vst [vmem:[%s435 + $0x8] sm:$0xff] %v434
        %s438 = scalar_lea.vmem %s401, 32 [#allocation12]
        %439 = vst [vmem:[%s438] sm:$0xff] %v411
        %440 = vst [vmem:[%s438 + $0x8] sm:$0xff] %v412
        %s441 = scalar_lea.vmem %s401, 48 [#allocation12]
        %442 = vst [vmem:[%s441] sm:$0xff] %v413
        %443 = vst [vmem:[%s441 + $0x8] sm:$0xff] %v414
        %s444 = sand.u32 %s184, 1
        %s445 = scalar_lea.sflag [#allocation4], %s444
        %s446 = sand.u32 %s184, 1
        %s447 = smul.addr %s446, 64
        %s448 = scalar_lea.vmem [#allocation12], %s447
        // Predicated region
        $region61: #{tpu_custom_call.1} parent=39 // pred_check
          %p449 = pneg %p194
        $region62: #{tpu_custom_call.1} parent=39 // pred_check_branch
          %451 = sbr.rel (%p449) target = $region64
        $region63: #{tpu_custom_call.1} parent=39 // pred_region
          #allocation14 [shape = 'u32[6]{0}', space=smem, size = 0x18, scoped, tag = 'DMA stride descriptor']
          %s452 = smul.u32 2, %s34
          %s454 = ssub.s32 1024, 1024
          %455 = vsyncadd %s445, %s454
          %s456 = smul.addr %s33, 16
          %s457 = sadd.s32 %s452, %s456
          %s458 = smul.addr %s457, 128
          %s459 = scalar_lea.hbm %s5, %s458
          %s461 = sshll.u32 1, 14
          %s462 = sxor.u32 4294967295, %s461
          %s465 = sshll.u32 7, 18
          %s466 = sxor.u32 4294967295, %s465
          %s467 = sand.u32 0, %s466
          %s469 = sor.u32 %s467, 0
          %s470 = sshll.u32 %s448, 4
          %s471 = int_to_ptr.vmem [resolvable:$true] %s470
          %477 = sst [smem:[#allocation14]] 256
          %s478 = scalar_lea.smem [#allocation14], 1
          %479 = sst [smem:[%s478]] 512
          %s480 = scalar_lea.smem [#allocation14], 2
          %481 = sst [smem:[%s480]] 2
          %s482 = scalar_lea.smem [#allocation14], 3
          %483 = sst [smem:[%s482]] 128
          %s484 = scalar_lea.smem [#allocation14], 4
          %485 = sst [smem:[%s484]] 128
          %s486 = scalar_lea.smem [#allocation14], 5
          %487 = sst [smem:[%s486]] 8
          %489 = dma.general %s471, 1024, %s459, %s445, 131072, [#allocation14], %s469, 0
        $region64: #{tpu_custom_call.1} parent=39 // pred_fallthru
          _
      $region40: #{tpu_custom_call.1} parent=5 // pred_fallthru
        _
      %p490 = scmp.le.s32.totalorder 2, %s24
      // Predicated region
      $region65: #{tpu_custom_call.1} parent=5 // pred_check
        %p491 = pneg %p490
      $region66: #{tpu_custom_call.1} parent=5 // pred_check_branch
        %493 = sbr.rel (%p491) target = $region68
      $region67: #{tpu_custom_call.1} parent=5 // pred_region
        %s494 = ssub.s32 %s24, 2
        // Predicated region
        $region69: #{tpu_custom_call.1} parent=67 // pred_check
          %p495 = pneg %p200
        $region70: #{tpu_custom_call.1} parent=67 // pred_check_branch
          %497 = sbr.rel (%p495) target = $region72
        $region71: #{tpu_custom_call.1} parent=67 // pred_region
          %s498 = sand.u32 %s185, 1
          %s499 = scalar_lea.sflag [#allocation4], %s498
          %s500 = sand.u32 %s185, 1
          %s501 = smul.addr %s500, 64
          %s502 = scalar_lea.vmem [#allocation12], %s501
          %503 = dma.done %s499, 1024
        $region72: #{tpu_custom_call.1} parent=67 // pred_fallthru
          _
      $region68: #{tpu_custom_call.1} parent=5 // pred_fallthru
        _
    $region6: #{tpu_custom_call.1} parent=1 // loop_footer
      %s28 = sadd.s32 1, %s24
    $region7: #{tpu_custom_call.1} parent=1 // loop_footer_branch
      %23 = sbr.rel target = $region3
    $region8: #{tpu_custom_call.1} parent=1 // loop_exit
      _
    %504 = vsyncpa [#allocation3], 1
    %s505 = scalar_lea.sflag [#allocation3], 1
    %506 = vsyncpa %s505, 1
    %507 = vsyncpa [#allocation8], 1
    %s508 = scalar_lea.sflag [#allocation8], 1
    %509 = vsyncpa %s508, 1
    %510 = vsyncpa [#allocation11], 1
    %s511 = scalar_lea.sflag [#allocation11], 1
    %512 = vsyncpa %s511, 1
    %513 = vsyncpa [#allocation4], 1
    %s514 = scalar_lea.sflag [#allocation4], 1
    %515 = vsyncpa %s514, 1
    %516 = vsyncpa [#allocation5], 1
    %s517 = scalar_lea.sflag [#allocation5], 1
    %518 = vsyncpa %s517, 1

</llo_original>
